<compile_context>
chip_gen: v5e
topology: v5e:2x2
jax: 0.10.0
libtpu: 0.0.40
codegen_flags: <defaults>
</compile_context>

<pallas_src>
import functools

import jax
import jax.numpy as jnp
from jax.experimental import pallas as pl
from jax.experimental.pallas import tpu as pltpu


# Tile-size targets (f32 bytes: x 2 MiB + w 2 MiB + out 1 MiB, double-buffered).
_TM_TARGET = 512
_TN_TARGET = 512
_TK_TARGET = 1024


# ---------------------------------------------------------------------------
# Kernels
# ---------------------------------------------------------------------------
# Direct-accumulation kernels (output dtype == f32): the output block index is
# independent of k, so the (tm, tn) block stays resident in VMEM across the
# reduction axis and we accumulate straight into it (no scratch, no finalize).
def _kernel_f32_bias(x_ref, w_ref, b_ref, o_ref):
    k = pl.program_id(2)

    @pl.when(k == 0)
    def _():
        o_ref[...] = jnp.broadcast_to(b_ref[...], o_ref.shape).astype(o_ref.dtype)

    o_ref[...] += jnp.dot(x_ref[...], w_ref[...],
                          preferred_element_type=jnp.float32)


def _kernel_f32_nobias(x_ref, w_ref, o_ref):
    k = pl.program_id(2)

    @pl.when(k == 0)
    def _():
        o_ref[...] = jnp.zeros_like(o_ref)

    o_ref[...] += jnp.dot(x_ref[...], w_ref[...],
                          preferred_element_type=jnp.float32)


# Scratch-accumulator kernels (narrow output dtypes, e.g. bf16): keep an f32
# accumulator and cast once on the last k step.
def _kernel_acc_bias(x_ref, w_ref, b_ref, o_ref, acc_ref):
    k = pl.program_id(2)

    @pl.when(k == 0)
    def _():
        acc_ref[...] = jnp.zeros_like(acc_ref)

    acc_ref[...] += jnp.dot(x_ref[...], w_ref[...],
                            preferred_element_type=jnp.float32)

    @pl.when(k == pl.num_programs(2) - 1)
    def _():
        o_ref[...] = (acc_ref[...] + b_ref[...]).astype(o_ref.dtype)


def _kernel_acc_nobias(x_ref, w_ref, o_ref, acc_ref):
    k = pl.program_id(2)

    @pl.when(k == 0)
    def _():
        acc_ref[...] = jnp.zeros_like(acc_ref)

    acc_ref[...] += jnp.dot(x_ref[...], w_ref[...],
                            preferred_element_type=jnp.float32)

    @pl.when(k == pl.num_programs(2) - 1)
    def _():
        o_ref[...] = acc_ref[...].astype(o_ref.dtype)


# ---------------------------------------------------------------------------
# Helpers
# ---------------------------------------------------------------------------
def _round_up(x, m):
    return ((x + m - 1) // m) * m


def _sublane_align(dtype):
    # 8 sublanes for 4-byte dtypes, 16 for bf16/fp16, 32 for 1-byte dtypes.
    return max(8, 32 // jnp.dtype(dtype).itemsize)


def _choose_tile(dim, align, target):
    """Largest tile (multiple of `align`, <= target) with <=12.5% extra padding
    over the mandatory `align` padding of `dim`."""
    dim = max(int(dim), 1)
    d = _round_up(dim, align)
    if d <= target:
        return d
    budget = d + d // 8
    for t in range(target, align - 1, -align):
        if _round_up(dim, t) <= budget:
            return t
    return align


def _vmem_limit_bytes(need_bytes):
    """Per-step footprint + headroom, capped by the chip's physical VMEM."""
    limit = max(int(need_bytes * 3 // 2) + (4 << 20), 32 << 20)
    cap = None
    try:
        cap = getattr(pltpu.get_tpu_info(), "vmem_capacity_bytes", None)
    except Exception:
        cap = None
    if isinstance(cap, int) and cap > 0:
        limit = min(limit, int(cap * 9 // 10))   # v7x: 64 MiB physical
    else:
        limit = min(limit, 64 << 20)
    return limit


def _pack_weights(weight, bias, *, tn, tk):
    """One-time prep: zero-pad and transpose W (N, K) -> (K_pad, N_pad) so the
    kernel RHS is already in canonical (tk, tn) layout; pad bias to (1, N_pad)."""
    N, K = weight.shape
    N_pad = _round_up(N, tn)
    K_pad = _round_up(K, tk)
    w_kn = jnp.zeros((K_pad, N_pad), weight.dtype).at[:K, :N].set(weight.T)
    if bias is None:
        return w_kn, None
    b2d = jnp.zeros((1, N_pad), bias.dtype).at[0, :N].set(bias)
    return w_kn, b2d


# ---------------------------------------------------------------------------
# pallas_call wrapper
# ---------------------------------------------------------------------------
@functools.partial(jax.jit, static_argnames=("n_out", "tm", "tn", "tk"))
def _linear_packed_impl(x, w_kn, bias2d, *, n_out, tm, tn, tk):
    M, K = x.shape
    K_pad, N_pad = w_kn.shape
    M_pad = _round_up(M, tm)

    # Only x needs per-call padding; the weight/bias were packed once.
    if M_pad != M or K_pad != K:
        x_p = jnp.pad(x, ((0, M_pad - M), (0, K_pad - K)))
    else:
        x_p = x

    grid = (M_pad // tm, N_pad // tn, K_pad // tk)
    # NOTE(v7x): with "parallel" i/j axes the (i, j) blocks are sharded across
    # the 2 TensorCores; problems larger than one tile automatically expose
    # >= 2 parallel blocks.

    x_spec = pl.BlockSpec((tm, tk), lambda i, j, k: (i, k))
    w_spec = pl.BlockSpec((tk, tn), lambda i, j, k: (k, j))
    b_spec = pl.BlockSpec((1, tn), lambda i, j, k: (0, j))
    o_spec = pl.BlockSpec((tm, tn), lambda i, j, k: (i, j))

    out_dtype = x.dtype
    out_shape = jax.ShapeDtypeStruct((M_pad, N_pad), out_dtype)

    has_bias = bias2d is not None
    direct = jnp.dtype(out_dtype) == jnp.dtype(jnp.float32)

    if direct:
        kernel = _kernel_f32_bias if has_bias else _kernel_f32_nobias
        scratch = []
    else:
        kernel = _kernel_acc_bias if has_bias else _kernel_acc_nobias
        scratch = [pltpu.VMEM((tm, tn), jnp.float32)]

    in_specs = [x_spec, w_spec] + ([b_spec] if has_bias else [])
    args = (x_p, w_kn) + ((bias2d,) if has_bias else ())

    x_b = jnp.dtype(x.dtype).itemsize
    w_b = jnp.dtype(w_kn.dtype).itemsize
    o_b = jnp.dtype(out_dtype).itemsize

    # Double-buffered per-step VMEM footprint (+ f32 scratch if used).
    need = 2 * (tm * tk * x_b + tk * tn * w_b + tm * tn * o_b + tn * x_b)
    if not direct:
        need += tm * tn * 4

    # Bytes include the refetch factors (x re-read per j block, W per i block).
    cost = pl.CostEstimate(
        flops=2 * M_pad * N_pad * K_pad,
        transcendentals=0,
        bytes_accessed=((N_pad // tn) * M_pad * K_pad * x_b
                        + (M_pad // tm) * K_pad * N_pad * w_b
                        + M_pad * N_pad * o_b
                        + ((M_pad // tm) * N_pad * x_b if has_bias else 0)),
    )
    compiler_params = pltpu.CompilerParams(
        dimension_semantics=("parallel", "parallel", "arbitrary"),
        vmem_limit_bytes=_vmem_limit_bytes(need),
    )

    out = pl.pallas_call(
        kernel,
        out_shape=out_shape,
        grid_spec=pltpu.PrefetchScalarGridSpec(
            num_scalar_prefetch=0,
            grid=grid,
            in_specs=in_specs,
            out_specs=o_spec,
            scratch_shapes=scratch,
        ),
        compiler_params=compiler_params,
        cost_estimate=cost,
    )(*args)

    if M_pad != M or N_pad != n_out:
        out = out[:M, :n_out]
    return out


def pallas_linear(x, weight, bias=None, *, tm=None, tn=None, tk=None):
    """Functional equivalent of LinearFunction.forward: x @ weight.T (+ bias).

    Packs (pads + transposes) the weight per call; use the `Linear` class to
    hoist that one-time cost out of the forward hot path.
    """
    M, K = x.shape
    N, K2 = weight.shape
    assert K == K2, "in_features mismatch"

    tn = tn if tn is not None else _choose_tile(N, 128, _TN_TARGET)
    tk = tk if tk is not None else _choose_tile(K, 128, _TK_TARGET)
    tm = tm if tm is not None else _choose_tile(M, _sublane_align(x.dtype),
                                                _TM_TARGET)
    assert tn % 128 == 0 and tk % 128 == 0
    assert tm % _sublane_align(x.dtype) == 0

    w_kn, b2d = _pack_weights(weight, bias, tn=tn, tk=tk)
    return _linear_packed_impl(x, w_kn, b2d, n_out=N, tm=tm, tn=tn, tk=tk)


class Linear:
    """JAX/Pallas mirror of the PyTorch `Linear` module (forward only)."""

    def __init__(self, input_features, output_features, bias=True, key=None,
                 dtype=jnp.float32):
        if key is None:
            key = jax.random.PRNGKey(0)
        kw, kb = jax.random.split(key)
        self.input_features = input_features
        self.output_features = output_features
        # weight.data.uniform_(-0.1, 0.1), shape (out_features, in_features)
        self.weight = jax.random.uniform(
            kw, (output_features, input_features),
            minval=-0.1, maxval=0.1, dtype=dtype)
        self.bias = (jax.random.uniform(
            kb, (output_features,), minval=-0.1, maxval=0.1, dtype=dtype)
            if bias else None)

        # One-time prep, hoisted out of the per-call path: choose (tn, tk),
        # pad + transpose the weight to (K_pad, N_pad), pad the bias.
        self._tn = _choose_tile(output_features, 128, _TN_TARGET)
        self._tk = _choose_tile(input_features, 128, _TK_TARGET)
        self._w_kn, self._b2d = _pack_weights(self.weight, self.bias,
                                              tn=self._tn, tk=self._tk)
        jax.block_until_ready(self._w_kn)

    def __call__(self, x):
        tm = _choose_tile(x.shape[0], _sublane_align(x.dtype), _TM_TARGET)
        return _linear_packed_impl(x, self._w_kn, self._b2d,
                                   n_out=self.output_features,
                                   tm=tm, tn=self._tn, tk=self._tk)


if __name__ == "__main__":
    key = jax.random.PRNGKey(0)
    kx, kp, k2, k3, k4 = jax.random.split(key, 5)

    # --- Check 1: module-level forward (ragged small shapes, packed weight) ---
    batch, in_features, out_features = 8, 32, 16
    x = jax.random.normal(kx, (batch, in_features), dtype=jnp.float32)
    layer = Linear(in_features, out_features, bias=True, key=kp)
    y = jax.block_until_ready(layer(x))
    y_ref = x @ layer.weight.T + layer.bias[None, :]
    assert y.shape == (batch, out_features)
    assert jnp.allclose(y, y_ref, atol=1e-5, rtol=1e-5)

    # --- Check 2: multi-step (i, j, k) grid with explicit small tiles ---
    # Exercises k-accumulation into the resident output block + bias-once init.
    M2, K2d, N2 = 128, 256, 256
    x2 = jax.random.normal(k2, (M2, K2d), dtype=jnp.float32)
    w2 = jax.random.uniform(k3, (N2, K2d), minval=-0.1, maxval=0.1,
                            dtype=jnp.float32)
    b2 = jax.random.uniform(k4, (N2,), minval=-0.1, maxval=0.1,
                            dtype=jnp.float32)
    y2 = jax.block_until_ready(
        pallas_linear(x2, w2, b2, tm=64, tn=128, tk=128))
    y2_ref = x2 @ w2.T + b2[None, :]
    assert jnp.allclose(y2, y2_ref, atol=1e-4, rtol=1e-4)

    # --- Check 3: no-bias path with default (auto-clamped) tiles ---
    y3 = jax.block_until_ready(pallas_linear(x2, w2, None))
    assert jnp.allclose(y3, x2 @ w2.T, atol=1e-4, rtol=1e-4)

    print("KERNEL_OK")
</pallas_src>

<mosaic_0001>
module attributes {stable_mosaic.version = 11 : i64} {
  func.func @_kernel_f32_bias(%arg0: i32, %arg1: i32, %arg2: i32, %arg3: memref<8x128xf32, #tpu.memory_space<vmem>>, %arg4: memref<128x128xf32, #tpu.memory_space<vmem>>, %arg5: memref<1x128xf32, #tpu.memory_space<vmem>>, %arg6: memref<8x128xf32, #tpu.memory_space<vmem>>) attributes {dimension_semantics = [#tpu.dimension_semantics<parallel>, #tpu.dimension_semantics<parallel>, #tpu.dimension_semantics<arbitrary>], iteration_bounds = array<i64: 1, 1, 1>, scalar_prefetch = 0 : i64, scratch_operands = 0 : i64, tpu.core_type = #tpu.core_type<tc>, window_params = [{transform_indices = @transform_0, window_bounds = array<i64: 8, 128>}, {transform_indices = @transform_1, window_bounds = array<i64: 128, 128>}, {transform_indices = @transform_2, window_bounds = array<i64: 1, 128>}, {transform_indices = @transform_3, window_bounds = array<i64: 8, 128>}]} {
    %c0_i32 = arith.constant 0 : i32
    %0 = arith.cmpi eq, %arg2, %c0_i32 : i32
    %1 = arith.extui %0 : i1 to i32
    %c0_i32_0 = arith.constant 0 : i32
    %2 = arith.cmpi ne, %1, %c0_i32_0 : i32
    scf.if %2 {
      %c0_8 = arith.constant 0 : index
      %c0_9 = arith.constant 0 : index
      %9 = vector.load %arg5[%c0_8, %c0_9] : memref<1x128xf32, #tpu.memory_space<vmem>>, vector<1x128xf32>
      %10 = vector.shape_cast %9 : vector<1x128xf32> to vector<1x128xf32>
      %11 = vector.broadcast %10 : vector<1x128xf32> to vector<8x128xf32>
      %c0_10 = arith.constant 0 : index
      %c0_11 = arith.constant 0 : index
      %12 = vector.load %arg6[%c0_10, %c0_11] : memref<8x128xf32, #tpu.memory_space<vmem>>, vector<8x128xf32>
      tpu.vector_store %arg6[%c0_10, %c0_11], %11 {strides = array<i32>} : memref<8x128xf32, #tpu.memory_space<vmem>>, vector<8x128xf32>,
    } else {
    }
    %c0 = arith.constant 0 : index
    %c0_1 = arith.constant 0 : index
    %3 = vector.load %arg6[%c0, %c0_1] : memref<8x128xf32, #tpu.memory_space<vmem>>, vector<8x128xf32>
    %c0_2 = arith.constant 0 : index
    %c0_3 = arith.constant 0 : index
    %4 = vector.load %arg3[%c0_2, %c0_3] : memref<8x128xf32, #tpu.memory_space<vmem>>, vector<8x128xf32>
    %c0_4 = arith.constant 0 : index
    %c0_5 = arith.constant 0 : index
    %5 = vector.load %arg4[%c0_4, %c0_5] : memref<128x128xf32, #tpu.memory_space<vmem>>, vector<128x128xf32>
    %cst = arith.constant dense<0.000000e+00> : vector<8x128xf32>
    %6 = tpu.matmul %4, %5, %cst {dimension_numbers = #tpu.dot_dimension_numbers<[1], [0], [0], [1], [0, 0, 1, 1], [], []>} : vector<8x128xf32>, vector<128x128xf32>, vector<8x128xf32> -> vector<8x128xf32>
    %7 = arith.addf %3, %6 : vector<8x128xf32>
    %c0_6 = arith.constant 0 : index
    %c0_7 = arith.constant 0 : index
    %8 = vector.load %arg6[%c0_6, %c0_7] : memref<8x128xf32, #tpu.memory_space<vmem>>, vector<8x128xf32>
    tpu.vector_store %arg6[%c0_6, %c0_7], %7 {strides = array<i32>} : memref<8x128xf32, #tpu.memory_space<vmem>>, vector<8x128xf32>,
    return
  }
  func.func @transform_0(%arg0: i32, %arg1: i32, %arg2: i32) -> (i32, i32) {
    %c0_i32 = arith.constant 0 : i32
    return %arg0, %arg2 : i32, i32
  }
  func.func @transform_1(%arg0: i32, %arg1: i32, %arg2: i32) -> (i32, i32) {
    %c0_i32 = arith.constant 0 : i32
    return %arg2, %arg1 : i32, i32
  }
  func.func @transform_2(%arg0: i32, %arg1: i32, %arg2: i32) -> (i32, i32) {
    %c0_i32 = arith.constant 0 : i32
    %c0_i32_0 = arith.constant 0 : i32
    return %c0_i32, %arg1 : i32, i32
  }
  func.func @transform_3(%arg0: i32, %arg1: i32, %arg2: i32) -> (i32, i32) {
    %c0_i32 = arith.constant 0 : i32
    return %arg0, %arg1 : i32, i32
  }
}

</mosaic_0001>

<llo_original>
// kernel: _linear_packed_impl.1
$region0: #{_linear_packed_impl.1}
  #allocation0 [shape = 'u32[]', space=smem, size = 0x4, offset = 0x4, fixed_abs, tag = 'smem constant byte address 0x4 - core index']
  #allocation1 [shape = 'u32[72,128]{1,0:T(1,128)}', space=vmem, size = 0x9000, scoped, tag = 'internal scratch']
  %s0 = inlined_call_operand.vmem [shape: f32[8,128], index: 0, kind: input, shape index: {}]
  %s1 = inlined_call_operand.hbm [shape: f32[128,128], index: 1, kind: input, shape index: {}]
  %s2 = inlined_call_operand.vmem [shape: f32[1,128], index: 2, kind: input, shape index: {}]
  %s3 = inlined_call_operand.hbm [shape: f32[8,128], index: 3, kind: output, shape index: {}]
  %s4 = sld [smem:[#allocation0]]
  $region30: #{_linear_packed_impl.1} parent=0
    _
  %s6 = ssub.s32 1, %s4
  %s7 = scalar_select 0, %s6, %s4
  $region1: #{_linear_packed_impl.1} parent=0
    #allocation2 [shape = 'u8[65536]{0}', space=vmem, size = 0x10000, scoped, tag = 'input window, operand 1, single buffered']
    #allocation3 [shape = 's32[1]{0}', space=sflag, size = 0x4, scoped, tag = 'scoped memory for _linear_packed_impl.1']
    #allocation4 [shape = 's32[1]{0}', space=sflag, size = 0x4, scoped, tag = 'scoped memory for _linear_packed_impl.1']
    #allocation5 [shape = 'u8[4096]{0}', space=vmem, size = 0x1000, scoped, tag = 'output window, operand 0, single buffered']
    %8 = vsyncpa [#allocation3], 0
    %9 = vsyncpa [#allocation4], 0
    // Predicated region
    $region2: #{_linear_packed_impl.1} parent=1 // pred_check
      _
    $region3: #{_linear_packed_impl.1} parent=1 // pred_check_branch
      %11 = sbr.rel (0) target = $region5
    $region4: #{_linear_packed_impl.1} parent=1 // pred_region
      _
    $region5: #{_linear_packed_impl.1} parent=1 // pred_fallthru
      _
    // Predicated region
    $region6: #{_linear_packed_impl.1} parent=1 // pred_check
      _
    $region7: #{_linear_packed_impl.1} parent=1 // pred_check_branch
      %13 = sbr.rel (0) target = $region9
    $region8: #{_linear_packed_impl.1} parent=1 // pred_region
      %15 = vsyncadd [#allocation3], 0
      %s16 = sshll.u32 %s1, 4
      %s17 = int_to_ptr.hbm [resolvable:$true] %s16
      %s18 = sshll.u32 [#allocation2], 4
      %s19 = int_to_ptr.vmem [resolvable:$true] %s18
      %24 = dma.hbm_to_vmem [thread:$0]  %s17, 2048, %s19, [#allocation3], 128, 128, 8
    $region9: #{_linear_packed_impl.1} parent=1 // pred_fallthru
      _
    // Predicated region
    $region10: #{_linear_packed_impl.1} parent=1 // pred_check
      _
    $region11: #{_linear_packed_impl.1} parent=1 // pred_check_branch
      %26 = sbr.rel (0) target = $region13
    $region12: #{_linear_packed_impl.1} parent=1 // pred_region
      _
    $region13: #{_linear_packed_impl.1} parent=1 // pred_fallthru
      _
    // Predicated region
    $region14: #{_linear_packed_impl.1} parent=1 // pred_check
      _
    $region15: #{_linear_packed_impl.1} parent=1 // pred_check_branch
      %28 = sbr.rel (0) target = $region17
    $region16: #{_linear_packed_impl.1} parent=1 // pred_region
      %30 = dma.done [#allocation3], 2048
    $region17: #{_linear_packed_impl.1} parent=1 // pred_fallthru
      _
    %p31 = scmp.eq.s32.totalorder 0, 0
    // Predicated region
    $region18: #{_linear_packed_impl.1} parent=1 // pred_check
      %p32 = pneg %p31
    $region19: #{_linear_packed_impl.1} parent=1 // pred_check_branch
      %34 = sbr.rel (%p32) target = $region21
    $region20: #{_linear_packed_impl.1} parent=1 // pred_region
      %v35 = vld [vmem:[%s2] sm:$0x1]
      %v37 = vperm.slane %v35, 0
      %39 = vst [vmem:[#allocation5] sm:$0xff] %v37
    $region21: #{_linear_packed_impl.1} parent=1 // pred_fallthru
      _
    %v40 = vld [vmem:[#allocation5] sm:$0xff]
    %v41 = vld [vmem:[%s0] sm:$0xff]
    %v42 = vld [vmem:[#allocation2] sm:$0xff]
    %v43 = vld [vmem:[#allocation2 + $0x8] sm:$0xff]
    %v44 = vld [vmem:[#allocation2 + $0x10] sm:$0xff]
    %v45 = vld [vmem:[#allocation2 + $0x18] sm:$0xff]
    %v46 = vld [vmem:[#allocation2 + $0x20] sm:$0xff]
    %v47 = vld [vmem:[#allocation2 + $0x28] sm:$0xff]
    %v48 = vld [vmem:[#allocation2 + $0x30] sm:$0xff]
    %v49 = vld [vmem:[#allocation2 + $0x38] sm:$0xff]
    %v50 = vld [vmem:[#allocation2 + $0x40] sm:$0xff]
    %v51 = vld [vmem:[#allocation2 + $0x48] sm:$0xff]
    %v52 = vld [vmem:[#allocation2 + $0x50] sm:$0xff]
    %v53 = vld [vmem:[#allocation2 + $0x58] sm:$0xff]
    %v54 = vld [vmem:[#allocation2 + $0x60] sm:$0xff]
    %v55 = vld [vmem:[#allocation2 + $0x68] sm:$0xff]
    %v56 = vld [vmem:[#allocation2 + $0x70] sm:$0xff]
    %v57 = vld [vmem:[#allocation2 + $0x78] sm:$0xff]
    %58 = vmatpush.msra.mxu0 %v57
    %59 = vmatpush.msra.mxu0 %v56
    %60 = vmatpush.msra.mxu0 %v55
    %61 = vmatpush.msra.mxu0 %v54
    %62 = vmatpush.msra.mxu0 %v53
    %63 = vmatpush.msra.mxu0 %v52
    %64 = vmatpush.msra.mxu0 %v51
    %65 = vmatpush.msra.mxu0 %v50
    %66 = vmatpush.msra.mxu0 %v49
    %67 = vmatpush.msra.mxu0 %v48
    %68 = vmatpush.msra.mxu0 %v47
    %69 = vmatpush.msra.mxu0 %v46
    %70 = vmatpush.msra.mxu0 %v45
    %71 = vmatpush.msra.mxu0 %v44
    %72 = vmatpush.msra.mxu0 %v43
    %73 = vmatpush.msra.mxu0 %v42
    %74 = vmatmul.f32.gmra.mxu0 %v41
    %v75 = vpop.f32.mrf.mxu0
    %v76 = vadd.f32 0.0, %v75
    %77 = vdwg.mxu0
    %v78 = vadd.f32 %v40, %v76
    %79 = vst [vmem:[#allocation5] sm:$0xff] %v78
    // Predicated region
    $region22: #{_linear_packed_impl.1} parent=1 // pred_check
      _
    $region23: #{_linear_packed_impl.1} parent=1 // pred_check_branch
      %81 = sbr.rel (0) target = $region25
    $region24: #{_linear_packed_impl.1} parent=1 // pred_region
      %83 = vsyncadd [#allocation4], 0
      %s85 = sshll.u32 [#allocation5], 4
      %s86 = int_to_ptr.vmem [resolvable:$true] %s85
      %s87 = sshll.u32 %s3, 4
      %s88 = int_to_ptr.hbm [resolvable:$true] %s87
      %90 = dma.vmem_to_hbm [thread:$0]  %s86, 128, %s88, [#allocation4]
    $region25: #{_linear_packed_impl.1} parent=1 // pred_fallthru
      _
    // Predicated region
    $region26: #{_linear_packed_impl.1} parent=1 // pred_check
      _
    $region27: #{_linear_packed_impl.1} parent=1 // pred_check_branch
      %92 = sbr.rel (0) target = $region29
    $region28: #{_linear_packed_impl.1} parent=1 // pred_region
      %94 = dma.done [#allocation4], 128
    $region29: #{_linear_packed_impl.1} parent=1 // pred_fallthru
      _
    %95 = vsyncpa [#allocation3], 1
    %96 = vsyncpa [#allocation4], 1

</llo_original>
